<compile_context>
chip_gen: v5e
topology: v5e:2x2
jax: 0.10.0
libtpu: 0.0.40
codegen_flags: <defaults>
</compile_context>

<pallas_src>
import functools

import jax
import jax.numpy as jnp
from jax import lax
from jax.experimental import pallas as pl
from jax.experimental.pallas import tpu as pltpu


def _pooling_kernel(x_ref, gamma_ref, beta_ref, o_ref, *, pool: int, c: int, eps: float):
    # x_ref: (1, TT, pool*C) — `pool` consecutive timesteps packed along the lane axis.
    # Windowed sum via static lane slices (no strided sublane access, no zero-init).
    acc = x_ref[0, :, 0:c].astype(jnp.float32)
    for k in range(1, pool):  # small static unroll over the pooling window
        acc = acc + x_ref[0, :, k * c:(k + 1) * c].astype(jnp.float32)

    # avg_pool + "max_pool" (also AvgPool1d)  ==  2 * mean over each window.
    pooled = acc * (2.0 / pool)  # (TT, C)

    # One-pass LayerNorm statistics over the channel (last) axis.
    s = jnp.sum(pooled, axis=-1, keepdims=True)
    ss = jnp.sum(pooled * pooled, axis=-1, keepdims=True)
    mean = s * (1.0 / c)
    var = ss * (1.0 / c) - mean * mean
    inv = lax.rsqrt(var + eps)

    out = (pooled - mean) * inv * gamma_ref[...].astype(jnp.float32) \
        + beta_ref[...].astype(jnp.float32)
    o_ref[0] = out.astype(o_ref.dtype)


def _pick_time_tile(t_out: int, row_bytes: int, budget_bytes: int = 2 * 1024 * 1024) -> int:
    """Largest multiple-of-8 divisor of t_out whose input block fits the budget."""
    cap = max(1, min(t_out, budget_bytes // max(row_bytes, 1)))
    start = cap - cap % 8
    for tt in range(start, 0, -8):
        if t_out % tt == 0:
            return tt
    return t_out  # fall back to the full time extent (always a legal block shape)


def pooling_module(x, gamma, beta, *, pool: int, eps: float = 1e-5):
    """x: (B, T, C); gamma/beta: (C,). Returns (B, T // pool, C)."""
    B, T, C = x.shape
    t_out = T // pool
    if T != t_out * pool:  # AvgPool1d drops the trailing remainder
        x = x[:, : t_out * pool, :]

    # Free, contiguous reshape: fold each pooling window into the lane (last) dim.
    x_p = x.reshape(B, t_out, pool * C)

    gamma2 = gamma.reshape(1, C)
    beta2 = beta.reshape(1, C)

    itemsize = jnp.dtype(x.dtype).itemsize
    tt = _pick_time_tile(t_out, pool * C * itemsize)
    n_t = t_out // tt

    kernel = functools.partial(_pooling_kernel, pool=pool, c=C, eps=eps)

    # Advisory cost: purely HBM-bandwidth bound.
    bytes_accessed = (B * t_out * pool * C + B * t_out * C) * itemsize + 2 * C * 4
    cost = pl.CostEstimate(
        flops=B * t_out * C * (pool + 8),
        transcendentals=B * t_out,
        bytes_accessed=bytes_accessed,
    )

    # TODO(synk): if C is far below 128 (lane-sparse) in production, pad C to a multiple of
    # 128 (with masked LayerNorm stats) or pack time rows into lanes for unmasked stores.
    return pl.pallas_call(
        kernel,
        out_shape=jax.ShapeDtypeStruct((B, t_out, C), x.dtype),
        grid_spec=pltpu.PrefetchScalarGridSpec(
            num_scalar_prefetch=0,
            grid=(B, n_t),
            in_specs=[
                pl.BlockSpec((1, tt, pool * C), lambda b, t: (b, t, 0)),
                pl.BlockSpec((1, C), lambda b, t: (0, 0)),
                pl.BlockSpec((1, C), lambda b, t: (0, 0)),
            ],
            out_specs=pl.BlockSpec((1, tt, C), lambda b, t: (b, t, 0)),
        ),
        compiler_params=pltpu.CompilerParams(
            dimension_semantics=("parallel", "parallel"),
        ),
        cost_estimate=cost,
    )(x_p, gamma2, beta2)


def pooling_module_ref(x, gamma, beta, *, pool: int, eps: float = 1e-5):
    """Pure-JAX reference mirroring the PyTorch forward."""
    B, T, C = x.shape
    t_out = T // pool
    x = x[:, : t_out * pool, :].reshape(B, t_out, pool, C)
    pooled = 2.0 * jnp.mean(x, axis=2)  # avg_pool + "max_pool" (also AvgPool1d)
    mean = jnp.mean(pooled, axis=-1, keepdims=True)
    var = jnp.mean((pooled - mean) ** 2, axis=-1, keepdims=True)
    normed = (pooled - mean) / jnp.sqrt(var + eps)
    return normed * gamma + beta


if __name__ == "__main__":
    # Small, deterministic example consistent with the module: (B, T, C)
    B, T, C = 2, 8, 32        # emb_dim = C = 32
    POOL = 2

    key = jax.random.PRNGKey(0)
    kx, kg, kb = jax.random.split(key, 3)
    x = jax.random.normal(kx, (B, T, C), dtype=jnp.float32)
    # LayerNorm params (PyTorch default is ones/zeros; perturb so the affine part is exercised).
    gamma = 1.0 + 0.1 * jax.random.normal(kg, (C,), dtype=jnp.float32)
    beta = 0.1 * jax.random.normal(kb, (C,), dtype=jnp.float32)

    out = pooling_module(x, gamma, beta, pool=POOL)
    out = jax.block_until_ready(out)

    ref = pooling_module_ref(x, gamma, beta, pool=POOL)
    assert out.shape == (B, T // POOL, C)
    assert jnp.allclose(out, ref, atol=1e-5, rtol=1e-5), "mismatch vs reference"

    print("KERNEL_OK")
</pallas_src>

<mosaic_0001>
module attributes {stable_mosaic.version = 11 : i64} {
  func.func @_pooling_kernel(%arg0: i32, %arg1: i32, %arg2: memref<1x4x64xf32, #tpu.memory_space<vmem>>, %arg3: memref<1x32xf32, #tpu.memory_space<vmem>>, %arg4: memref<1x32xf32, #tpu.memory_space<vmem>>, %arg5: memref<1x4x32xf32, #tpu.memory_space<vmem>>) attributes {dimension_semantics = [#tpu.dimension_semantics<parallel>, #tpu.dimension_semantics<parallel>], iteration_bounds = array<i64: 2, 1>, scalar_prefetch = 0 : i64, scratch_operands = 0 : i64, tpu.core_type = #tpu.core_type<tc>, window_params = [{transform_indices = @transform_0, window_bounds = array<i64: 1, 4, 64>}, {pipeline_mode = #tpu.pipeline_mode<synchronous>, transform_indices = @transform_1, window_bounds = array<i64: 1, 32>}, {pipeline_mode = #tpu.pipeline_mode<synchronous>, transform_indices = @transform_2, window_bounds = array<i64: 1, 32>}, {transform_indices = @transform_3, window_bounds = array<i64: 1, 4, 32>}]} {
    %c0 = arith.constant 0 : index
    %c0_0 = arith.constant 0 : index
    %c0_1 = arith.constant 0 : index
    %0 = vector.load %arg2[%c0, %c0_0, %c0_1] : memref<1x4x64xf32, #tpu.memory_space<vmem>>, vector<1x4x32xf32>
    %1 = vector.shape_cast %0 : vector<1x4x32xf32> to vector<4x32xf32>
    %c0_2 = arith.constant 0 : index
    %c0_3 = arith.constant 0 : index
    %c32 = arith.constant 32 : index
    %2 = vector.load %arg2[%c0_2, %c0_3, %c32] : memref<1x4x64xf32, #tpu.memory_space<vmem>>, vector<1x4x32xf32>
    %3 = vector.shape_cast %2 : vector<1x4x32xf32> to vector<4x32xf32>
    %4 = arith.addf %1, %3 : vector<4x32xf32>
    %cst = arith.constant 1.000000e+00 : f32
    %5 = vector.broadcast %cst : f32 to vector<4x32xf32>
    %6 = arith.mulf %4, %5 : vector<4x32xf32>
    %cst_4 = arith.constant dense<0.000000e+00> : vector<4xf32>
    %7 = vector.multi_reduction <add>, %6, %cst_4 [1] : vector<4x32xf32> to vector<4xf32>
    %8 = vector.shape_cast %7 : vector<4xf32> to vector<4x1xf32>
    %9 = arith.mulf %6, %6 : vector<4x32xf32>
    %cst_5 = arith.constant dense<0.000000e+00> : vector<4xf32>
    %10 = vector.multi_reduction <add>, %9, %cst_5 [1] : vector<4x32xf32> to vector<4xf32>
    %11 = vector.shape_cast %10 : vector<4xf32> to vector<4x1xf32>
    %cst_6 = arith.constant 3.125000e-02 : f32
    %12 = vector.broadcast %cst_6 : f32 to vector<4x1xf32>
    %13 = arith.mulf %8, %12 : vector<4x1xf32>
    %cst_7 = arith.constant 3.125000e-02 : f32
    %14 = vector.broadcast %cst_7 : f32 to vector<4x1xf32>
    %15 = arith.mulf %11, %14 : vector<4x1xf32>
    %16 = arith.mulf %13, %13 : vector<4x1xf32>
    %17 = arith.subf %15, %16 : vector<4x1xf32>
    %cst_8 = arith.constant 9.99999974E-6 : f32
    %18 = vector.broadcast %cst_8 : f32 to vector<4x1xf32>
    %19 = arith.addf %17, %18 : vector<4x1xf32>
    %20 = math.rsqrt %19 : vector<4x1xf32>
    %21 = vector.broadcast %13 : vector<4x1xf32> to vector<4x32xf32>
    %22 = arith.subf %6, %21 : vector<4x32xf32>
    %23 = vector.broadcast %20 : vector<4x1xf32> to vector<4x32xf32>
    %24 = arith.mulf %22, %23 : vector<4x32xf32>
    %c0_9 = arith.constant 0 : index
    %c0_10 = arith.constant 0 : index
    %25 = vector.load %arg3[%c0_9, %c0_10] : memref<1x32xf32, #tpu.memory_space<vmem>>, vector<1x32xf32>
    %26 = vector.broadcast %25 : vector<1x32xf32> to vector<4x32xf32>
    %27 = arith.mulf %24, %26 : vector<4x32xf32>
    %c0_11 = arith.constant 0 : index
    %c0_12 = arith.constant 0 : index
    %28 = vector.load %arg4[%c0_11, %c0_12] : memref<1x32xf32, #tpu.memory_space<vmem>>, vector<1x32xf32>
    %29 = vector.broadcast %28 : vector<1x32xf32> to vector<4x32xf32>
    %30 = arith.addf %27, %29 : vector<4x32xf32>
    %c0_13 = arith.constant 0 : index
    %c0_14 = arith.constant 0 : index
    %c0_15 = arith.constant 0 : index
    %31 = vector.load %arg5[%c0_13, %c0_14, %c0_15] : memref<1x4x32xf32, #tpu.memory_space<vmem>>, vector<1x4x32xf32>
    %32 = vector.shape_cast %31 : vector<1x4x32xf32> to vector<4x32xf32>
    %33 = vector.shape_cast %30 : vector<4x32xf32> to vector<1x4x32xf32>
    tpu.vector_store %arg5[%c0_13, %c0_14, %c0_15], %33 {strides = array<i32>} : memref<1x4x32xf32, #tpu.memory_space<vmem>>, vector<1x4x32xf32>,
    return
  }
  func.func @transform_0(%arg0: i32, %arg1: i32) -> (i32, i32, i32) {
    %c0_i32 = arith.constant 0 : i32
    %c0_i32_0 = arith.constant 0 : i32
    return %arg0, %arg1, %c0_i32 : i32, i32, i32
  }
  func.func @transform_1(%arg0: i32, %arg1: i32) -> (i32, i32) {
    %c0_i32 = arith.constant 0 : i32
    %c0_i32_0 = arith.constant 0 : i32
    %c0_i32_1 = arith.constant 0 : i32
    return %c0_i32, %c0_i32_0 : i32, i32
  }
  func.func @transform_2(%arg0: i32, %arg1: i32) -> (i32, i32) {
    %c0_i32 = arith.constant 0 : i32
    %c0_i32_0 = arith.constant 0 : i32
    %c0_i32_1 = arith.constant 0 : i32
    return %c0_i32, %c0_i32_0 : i32, i32
  }
  func.func @transform_3(%arg0: i32, %arg1: i32) -> (i32, i32, i32) {
    %c0_i32 = arith.constant 0 : i32
    %c0_i32_0 = arith.constant 0 : i32
    return %arg0, %arg1, %c0_i32 : i32, i32, i32
  }
}

</mosaic_0001>

<llo_original>
// kernel: tpu_custom_call.1
$region0: #{tpu_custom_call.1}
  #allocation0 [shape = 'u32[]', space=smem, size = 0x4, offset = 0x4, fixed_abs, tag = 'smem constant byte address 0x4 - core index']
  #allocation1 [shape = 'u32[72,128]{1,0:T(1,128)}', space=vmem, size = 0x9000, scoped, tag = 'internal scratch']
  %s0 = inlined_call_operand.hbm [shape: f32[2,4,64], index: 0, kind: input, shape index: {}]
  %s1 = inlined_call_operand.hbm [shape: f32[1,32], index: 1, kind: input, shape index: {}]
  %s2 = inlined_call_operand.vmem [shape: f32[1,32], index: 2, kind: input, shape index: {}]
  %s3 = inlined_call_operand.hbm [shape: f32[2,4,32], index: 3, kind: output, shape index: {}]
  %s4 = sld [smem:[#allocation0]]
  $region53: #{tpu_custom_call.1} parent=0
    _
  %s6 = ssub.s32 1, %s4
  %s7 = scalar_select 0, %s6, %s4
  $region1: #{tpu_custom_call.1} parent=0
    #allocation2 [shape = 'u8[4096]{0}', space=vmem, size = 0x1000, scoped, tag = 'input window, operand 0']
    #allocation3 [shape = 's32[2]{0}', space=sflag, size = 0x8, scoped, tag = 'scoped memory for tpu_custom_call.1']
    #allocation4 [shape = 's32[2]{0}', space=sflag, size = 0x8, scoped, tag = 'scoped memory for tpu_custom_call.1']
    #allocation5 [shape = 'u8[512]{0}', space=vmem, size = 0x400, scoped, tag = 'input window, operand 1, single buffered']
    #allocation6 [shape = 's32[1]{0}', space=sflag, size = 0x4, scoped, tag = 'scoped memory for tpu_custom_call.1']
    #allocation7 [shape = 'u8[4096]{0}', space=vmem, size = 0x1000, scoped, tag = 'output window, operand 0']
    %8 = vsyncpa [#allocation3], 0
    %s9 = scalar_lea.sflag [#allocation3], 1
    %10 = vsyncpa %s9, 0
    %11 = vsyncpa [#allocation6], 0
    %12 = vsyncpa [#allocation4], 0
    %s13 = scalar_lea.sflag [#allocation4], 1
    %14 = vsyncpa %s13, 0
    loop: start=0, step=1, limit=4
    $region2: #{tpu_custom_call.1} parent=1 // loop_pre_header
      _
    $region3: #{tpu_custom_call.1} parent=1 // loop_header
      %s16 = sphi 0, %s20
      %p17 = scmp.ge.s32.totalorder %s16, 4
      %s23 = sphi 0, %s35
      %s24 = sphi 0, %s31
      %s25 = sphi 0, %s23
      %s26 = sphi 0, %s24
      %s27 = sphi 0, %s25
      %s28 = sphi 0, %s26
      %s40 = sphi 0, %s42
      %s43 = sphi 0, %s40
      %s44 = sphi 0, %s43
      %s60 = sphi 0, %s44
      %s64 = sphi 0, %s64
      %s66 = sphi 0, %s64
      %s67 = sphi 0, %s66
      %s81 = sphi 0, %s67
      %s85 = sphi 0, %s85
      %s87 = sphi 0, %s85
      %s88 = sphi 0, %s87
      %s102 = sphi 0, %s88
      %s110 = sphi 0, %s112
      %s113 = sphi 0, %s110
      %s114 = sphi 0, %s113
      %s130 = sphi 0, %s114
    $region4: #{tpu_custom_call.1} parent=1 // loop_header_branch
      %19 = sbr.rel (%p17) target = $region8
    $region5: #{tpu_custom_call.1} parent=1 // loop_body
      %s21 = ssub.s32 %s16, 1
      %s22 = ssub.s32 %s16, 2
      %s29 = sadd.s32 1, %s24
      %p30 = scmp.ge.s32.totalorder %s29, 1
      %s31 = scalar_select %p30, 0, %s29
      %s32 = sadd.s32 1, %s23
      %s33 = scalar_select %p30, %s32, %s23
      %p34 = scmp.ge.s32.totalorder %s33, 2
      %s35 = scalar_select %p34, 0, %s33
      %s36 = ssub.s32 %s23, %s35
      %s37 = ssub.s32 %s24, %s31
      %s38 = sor.u32 %s36, %s37
      %p39 = scmp.eq.s32.totalorder %s38, 0
      %s41 = sadd.s32 %s40, 1
      %s42 = scalar_select %p39, %s40, %s41
      %p45 = pneg %p39
      %p46 = scmp.eq.s32.totalorder %s16, 1
      %p47 = por %p45, %p46
      %p48 = scmp.ne.s32.totalorder %s40, %s43
      %p49 = scmp.eq.s32.totalorder %s16, 0
      %p50 = por %p48, %p49
      %p51 = scmp.ne.s32.totalorder %s40, %s43
      %p52 = scmp.eq.s32.totalorder %s21, 1
      %p53 = por %p51, %p52
      %p54 = scmp.ne.s32.totalorder %s43, %s44
      %p55 = scmp.eq.s32.totalorder %s21, 0
      %p56 = por %p54, %p55
      %p57 = scmp.ne.s32.totalorder %s43, %s44
      %p58 = scmp.eq.s32.totalorder %s22, 1
      %p59 = por %p57, %p58
      %p61 = scmp.ne.s32.totalorder %s44, %s60
      %p62 = scmp.eq.s32.totalorder %s22, 0
      %p63 = por %p61, %p62
      %s65 = sadd.s32 %s64, 1
      %p68 = scmp.eq.s32.totalorder %s16, 1
      %p69 = scmp.ne.s32.totalorder %s64, %s66
      %p70 = scmp.eq.s32.totalorder %s16, 0
      %p71 = por %p69, %p70
      %p72 = scmp.ne.s32.totalorder %s64, %s66
      %p73 = scmp.eq.s32.totalorder %s21, 1
      %p74 = por %p72, %p73
      %p75 = scmp.ne.s32.totalorder %s66, %s67
      %p76 = scmp.eq.s32.totalorder %s21, 0
      %p77 = por %p75, %p76
      %p78 = scmp.ne.s32.totalorder %s66, %s67
      %p79 = scmp.eq.s32.totalorder %s22, 1
      %p80 = por %p78, %p79
      %p82 = scmp.ne.s32.totalorder %s67, %s81
      %p83 = scmp.eq.s32.totalorder %s22, 0
      %p84 = por %p82, %p83
      %s86 = sadd.s32 %s85, 1
      %p89 = scmp.eq.s32.totalorder %s16, 1
      %p90 = scmp.ne.s32.totalorder %s85, %s87
      %p91 = scmp.eq.s32.totalorder %s16, 0
      %p92 = por %p90, %p91
      %p93 = scmp.ne.s32.totalorder %s85, %s87
      %p94 = scmp.eq.s32.totalorder %s21, 1
      %p95 = por %p93, %p94
      %p96 = scmp.ne.s32.totalorder %s87, %s88
      %p97 = scmp.eq.s32.totalorder %s21, 0
      %p98 = por %p96, %p97
      %p99 = scmp.ne.s32.totalorder %s87, %s88
      %p100 = scmp.eq.s32.totalorder %s22, 1
      %p101 = por %p99, %p100
      %p103 = scmp.ne.s32.totalorder %s88, %s102
      %p104 = scmp.eq.s32.totalorder %s22, 0
      %p105 = por %p103, %p104
      %s106 = ssub.s32 %s23, %s35
      %s107 = ssub.s32 %s24, %s31
      %s108 = sor.u32 %s106, %s107
      %p109 = scmp.eq.s32.totalorder %s108, 0
      %s111 = sadd.s32 %s110, 1
      %s112 = scalar_select %p109, %s110, %s111
      %p115 = pneg %p109
      %p116 = scmp.eq.s32.totalorder %s16, 1
      %p117 = por %p115, %p116
      %p118 = scmp.ne.s32.totalorder %s110, %s113
      %p119 = scmp.eq.s32.totalorder %s16, 0
      %p120 = por %p118, %p119
      %p121 = scmp.ne.s32.totalorder %s110, %s113
      %p122 = scmp.eq.s32.totalorder %s21, 1
      %p123 = por %p121, %p122
      %p124 = scmp.ne.s32.totalorder %s113, %s114
      %p125 = scmp.eq.s32.totalorder %s21, 0
      %p126 = por %p124, %p125
      %p127 = scmp.ne.s32.totalorder %s113, %s114
      %p128 = scmp.eq.s32.totalorder %s22, 1
      %p129 = por %p127, %p128
      %p131 = scmp.ne.s32.totalorder %s114, %s130
      %p132 = scmp.eq.s32.totalorder %s22, 0
      %p133 = por %p131, %p132
      %p134 = scmp.le.s32.totalorder 1, %s16
      %p135 = scmp.lt.s32.totalorder %s16, 3
      %p136 = pnand %p134, %p135
      %p137 = pneg %p136
      // Predicated region
      $region9: #{tpu_custom_call.1} parent=5 // pred_check
        _
      $region10: #{tpu_custom_call.1} parent=5 // pred_check_branch
        %139 = sbr.rel (%p136) target = $region12
      $region11: #{tpu_custom_call.1} parent=5 // pred_region
        %s140 = ssub.s32 %s16, 1
        // Predicated region
        $region13: #{tpu_custom_call.1} parent=11 // pred_check
          %p141 = pneg %p77
        $region14: #{tpu_custom_call.1} parent=11 // pred_check_branch
          %143 = sbr.rel (%p141) target = $region16
        $region15: #{tpu_custom_call.1} parent=11 // pred_region
          %145 = vsyncadd [#allocation6], 0
          %s147 = sshll.u32 %s1, 4
          %s148 = int_to_ptr.hbm [resolvable:$true] %s147
          %s149 = sshll.u32 [#allocation5], 4
          %s150 = int_to_ptr.vmem [resolvable:$true] %s149
          %152 = dma.hbm_to_vmem [thread:$0]  %s148, 16, %s150, [#allocation6]
        $region16: #{tpu_custom_call.1} parent=11 // pred_fallthru
          _
        // Predicated region
        $region17: #{tpu_custom_call.1} parent=11 // pred_check
          %p153 = pneg %p98
        $region18: #{tpu_custom_call.1} parent=11 // pred_check_branch
          %155 = sbr.rel (%p153) target = $region20
        $region19: #{tpu_custom_call.1} parent=11 // pred_region
          _
        $region20: #{tpu_custom_call.1} parent=11 // pred_fallthru
          _
      $region12: #{tpu_custom_call.1} parent=5 // pred_fallthru
        _
      %p156 = scmp.lt.s32.totalorder %s16, 2
      // Predicated region
      $region21: #{tpu_custom_call.1} parent=5 // pred_check
        %p157 = pneg %p156
      $region22: #{tpu_custom_call.1} parent=5 // pred_check_branch
        %159 = sbr.rel (%p157) target = $region24
      $region23: #{tpu_custom_call.1} parent=5 // pred_region
        // Predicated region
        $region25: #{tpu_custom_call.1} parent=23 // pred_check
          %p160 = pneg %p50
        $region26: #{tpu_custom_call.1} parent=23 // pred_check_branch
          %162 = sbr.rel (%p160) target = $region28
        $region27: #{tpu_custom_call.1} parent=23 // pred_region
          %s163 = sand.u32 %s40, 1
          %s164 = scalar_lea.sflag [#allocation3], %s163
          %s165 = sand.u32 %s40, 1
          %s166 = smul.addr %s165, 4
          %s167 = scalar_lea.vmem [#allocation2], %s166
          %169 = vsyncadd %s164, 0
          %s170 = sadd.s32 %s24, %s23
          %s171 = smul.addr %s170, 4
          %s172 = scalar_lea.hbm %s0, %s171
          %s174 = sshll.u32 %s172, 4
          %s175 = int_to_ptr.hbm [resolvable:$true] %s174
          %s176 = sshll.u32 %s167, 4
          %s177 = int_to_ptr.vmem [resolvable:$true] %s176
          %179 = dma.hbm_to_vmem [thread:$0]  %s175, 64, %s177, %s164
        $region28: #{tpu_custom_call.1} parent=23 // pred_fallthru
          _
      $region24: #{tpu_custom_call.1} parent=5 // pred_fallthru
        _
      %p180 = scmp.le.s32.totalorder 1, %s16
      %p181 = scmp.lt.s32.totalorder %s16, 3
      %p182 = pnand %p180, %p181
      %p183 = pneg %p182
      // Predicated region
      $region29: #{tpu_custom_call.1} parent=5 // pred_check
        _
      $region30: #{tpu_custom_call.1} parent=5 // pred_check_branch
        %185 = sbr.rel (%p182) target = $region32
      $region31: #{tpu_custom_call.1} parent=5 // pred_region
        %s186 = ssub.s32 %s16, 1
        %s187 = sand.u32 %s43, 1
        %s188 = scalar_lea.sflag [#allocation3], %s187
        %s189 = sand.u32 %s43, 1
        %s190 = smul.addr %s189, 4
        %s191 = scalar_lea.vmem [#allocation2], %s190
        // Predicated region
        $region33: #{tpu_custom_call.1} parent=31 // pred_check
          %p192 = pneg %p56
        $region34: #{tpu_custom_call.1} parent=31 // pred_check_branch
          %194 = sbr.rel (%p192) target = $region36
        $region35: #{tpu_custom_call.1} parent=31 // pred_region
          %196 = dma.done %s188, 64
        $region36: #{tpu_custom_call.1} parent=31 // pred_fallthru
          _
        // Predicated region
        $region37: #{tpu_custom_call.1} parent=31 // pred_check
          %p197 = pneg %p77
        $region38: #{tpu_custom_call.1} parent=31 // pred_check_branch
          %199 = sbr.rel (%p197) target = $region40
        $region39: #{tpu_custom_call.1} parent=31 // pred_region
          %201 = dma.done [#allocation6], 16
        $region40: #{tpu_custom_call.1} parent=31 // pred_fallthru
          _
        %s202 = sand.u32 %s43, 1
        %s203 = scalar_lea.sflag [#allocation3], %s202
        %s204 = sand.u32 %s43, 1
        %s205 = smul.addr %s204, 4
        %s206 = scalar_lea.vmem [#allocation2], %s205
        %p207 = pneg %p56
        %p208 = pneg %p53
        %p209 = pneg %p77
        %p210 = pneg %p74
        %p211 = pneg %p98
        %p212 = pneg %p95
        %p213 = pneg %p126
        %p214 = pneg %p123
        %s215 = sand.u32 %s113, 1
        %s216 = scalar_lea.sflag [#allocation4], %s215
        %s217 = sand.u32 %s113, 1
        %s218 = smul.addr %s217, 4
        %s219 = scalar_lea.vmem [#allocation7], %s218
        %v220 = vld [vmem:[%s191] sm:$0xf]
        %222 = vrot.lane.b32.xlu0 %v220, 96
        %v223 = vpop.permute.xlu0 %222
        %v225 = vadd.f32 %v220, %v223
        %vm226 = vcmask 257024
        %v227 = vsel %vm226, %v225, 0.0
        %228 = vadd.xlane.f32.xlu0 %v227
        %v229 = vpop.xlane.xlu0 %228
        %v230 = vmul.f32 %v225, %v225
        %v231 = vsel %vm226, %v230, 0.0
        %232 = vadd.xlane.f32.xlu0 %v231
        %v233 = vpop.xlane.xlu0 %232
        %v234 = vmul.f32 %v229, 0.03125
        %v235 = vmul.f32 %v233, 0.03125
        %v236 = vmul.f32 %v234, %v234
        %v237 = vsub.f32 %v235, %v236
        %v238 = vadd.f32 %v237, 1e-05
        %v239 = vrsqrt.pop %v238
        %v240 = vmul.f32 %v239, %v238
        %v241 = vmul.f32 %v240, %v239
        %v242 = vmul.f32 0.5, %v241
        %v243 = vsub.f32 1.5, %v242
        %v244 = vmul.f32 %v239, %v243
        %vm245 = vweird.f32 %v238
        %vm246 = vweird.f32 %v239
        %vm247 = vmor %vm245, %vm246
        %v248 = vsel %vm247, %v239, %v244
        %v249 = vsub.f32 %v225, %v234
        %v250 = vmul.f32 %v249, %v248
        %v251 = vld [vmem:[#allocation5] sm:$0x1]
        %v253 = vperm.slane %v251, 0
        %v255 = vmul.f32 %v250, %v253
        %v256 = vld [vmem:[%s2] sm:$0x1]
        %v258 = vperm.slane %v256, 0
        %v260 = vadd.f32 %v255, %v258
        %261 = vst.msk [vmem:[%s219] sm:$0xf] %vm226, %v260
        %s262 = sand.u32 %s113, 1
        %s263 = scalar_lea.sflag [#allocation4], %s262
        %s264 = sand.u32 %s113, 1
        %s265 = smul.addr %s264, 4
        %s266 = scalar_lea.vmem [#allocation7], %s265
        // Predicated region
        $region41: #{tpu_custom_call.1} parent=31 // pred_check
          %p267 = pneg %p123
        $region42: #{tpu_custom_call.1} parent=31 // pred_check_branch
          %269 = sbr.rel (%p267) target = $region44
        $region43: #{tpu_custom_call.1} parent=31 // pred_region
          %271 = vsyncadd %s263, 0
          %s272 = sadd.s32 %s26, %s25
          %s273 = smul.addr %s272, 4
          %s274 = scalar_lea.hbm %s3, %s273
          %s276 = sshll.u32 %s266, 4
          %s277 = int_to_ptr.vmem [resolvable:$true] %s276
          %s278 = sshll.u32 %s274, 4
          %s279 = int_to_ptr.hbm [resolvable:$true] %s278
          %281 = dma.vmem_to_hbm [thread:$0]  %s277, 64, %s279, %s263
        $region44: #{tpu_custom_call.1} parent=31 // pred_fallthru
          _
      $region32: #{tpu_custom_call.1} parent=5 // pred_fallthru
        _
      %p282 = scmp.le.s32.totalorder 2, %s16
      // Predicated region
      $region45: #{tpu_custom_call.1} parent=5 // pred_check
        %p283 = pneg %p282
      $region46: #{tpu_custom_call.1} parent=5 // pred_check_branch
        %285 = sbr.rel (%p283) target = $region48
      $region47: #{tpu_custom_call.1} parent=5 // pred_region
        %s286 = ssub.s32 %s16, 2
        // Predicated region
        $region49: #{tpu_custom_call.1} parent=47 // pred_check
          %p287 = pneg %p129
        $region50: #{tpu_custom_call.1} parent=47 // pred_check_branch
          %289 = sbr.rel (%p287) target = $region52
        $region51: #{tpu_custom_call.1} parent=47 // pred_region
          %s290 = sand.u32 %s114, 1
          %s291 = scalar_lea.sflag [#allocation4], %s290
          %s292 = sand.u32 %s114, 1
          %s293 = smul.addr %s292, 4
          %s294 = scalar_lea.vmem [#allocation7], %s293
          %296 = dma.done %s291, 64
        $region52: #{tpu_custom_call.1} parent=47 // pred_fallthru
          _
      $region48: #{tpu_custom_call.1} parent=5 // pred_fallthru
        _
    $region6: #{tpu_custom_call.1} parent=1 // loop_footer
      %s20 = sadd.s32 1, %s16
    $region7: #{tpu_custom_call.1} parent=1 // loop_footer_branch
      %15 = sbr.rel target = $region3
    $region8: #{tpu_custom_call.1} parent=1 // loop_exit
      _
    %297 = vsyncpa [#allocation3], 1
    %s298 = scalar_lea.sflag [#allocation3], 1
    %299 = vsyncpa %s298, 1
    %300 = vsyncpa [#allocation6], 1
    %301 = vsyncpa [#allocation4], 1
    %s302 = scalar_lea.sflag [#allocation4], 1
    %303 = vsyncpa %s302, 1

</llo_original>
